<compile_context>
chip_gen: v7x
topology: tpu7x:2x2x1
jax: 0.10.0
libtpu: 0.0.40
codegen_flags: <defaults>
</compile_context>

<pallas_src>
import functools

import numpy as np
import jax
import jax.numpy as jnp
from jax import lax
from jax.experimental import pallas as pl
from jax.experimental.pallas import tpu as pltpu


_VMEM_LIMIT_BYTES = 32 * 1024 * 1024      # safe scoped-VMEM limit on v5e/v6e/v7x
_STEP_BUDGET_BYTES = 16 * 1024 * 1024     # per-grid-step working-set budget


def _round_up(x, mult):
    return (x + mult - 1) // mult * mult


def _cdiv(a, b):
    return -(-a // b)


def _choose_tile(n, cap, mult):
    """Tile size (multiple of `mult`, <= cap) giving >=2 roughly even grid steps
    when possible (v7x megacore) and avoiding near-whole-tile padding."""
    n_up = _round_up(max(n, 1), mult)
    if n_up <= mult:
        return mult
    steps = max(2, _cdiv(n_up, cap))
    tile = _round_up(_cdiv(n_up, steps), mult)
    return min(tile, cap, n_up)


# -----------------------------------------------------------------------------
# Kernel 1: QKV SPDTransform as a single Kronecker matmul
#   out[t, :] = vec(X_t) @ [ (Wq⊗Wq)^T | (Wk⊗Wk)^T | (Wv⊗Wv)^T ]   (zero padded)
# -----------------------------------------------------------------------------
def _qkv_kernel(x_ref, w_ref, out_ref):
    # x_ref  : (TB, K_pad)        tile of flattened SPD matrices
    # w_ref  : (K_pad, N_pad)     stacked/padded Kronecker weights (constant block)
    # out_ref: (TB, N_pad)        lane-dense output slab
    out_ref[...] = jnp.dot(x_ref[...], w_ref[...],
                           preferred_element_type=jnp.float32)


def spd_qkv_transform(x_rows, w_mat):
    # x_rows: (n, K_pad) f32, w_mat: (K_pad, N_pad) f32
    n, k_pad = x_rows.shape
    n_out_pad = w_mat.shape[1]

    # Size the row tile against the VMEM budget (in + out, double-buffered).
    bytes_per_row = 4 * (k_pad + n_out_pad) * 2
    cap = max(8, (min(2048, _STEP_BUDGET_BYTES // bytes_per_row) // 8) * 8)
    tb = _choose_tile(n, cap, 8)
    n_pad = _round_up(n, tb)
    if n_pad != n:
        x_rows = jnp.pad(x_rows, ((0, n_pad - n), (0, 0)))

    out = pl.pallas_call(
        _qkv_kernel,
        out_shape=jax.ShapeDtypeStruct((n_pad, n_out_pad), jnp.float32),
        grid=(n_pad // tb,),
        in_specs=[
            pl.BlockSpec((tb, k_pad), lambda i: (i, 0)),
            # Weight block index never changes -> re-used across grid steps.
            # TODO(synk): single-buffer it (pl.Buffered(1) / VMEM scratch) if
            # VMEM ever gets tight at large d_in^2 * d_out^2 (matters on v7x).
            pl.BlockSpec((k_pad, n_out_pad), lambda i: (0, 0)),
        ],
        out_specs=pl.BlockSpec((tb, n_out_pad), lambda i: (i, 0)),
        compiler_params=pltpu.CompilerParams(
            dimension_semantics=("parallel",),
            vmem_limit_bytes=_VMEM_LIMIT_BYTES),
    )(x_rows, w_mat)
    return out[:n]


# -----------------------------------------------------------------------------
# Kernel 2: attention over the SPD manifold (batched over batch elements).
# logq/logk/logv arrive as three separate (bs, m, d_out^2) arrays — no stacked
# slab and no feature padding, so the kernel reads the producer's arrays
# directly. f is bounded in (0, 1], so no max-shift is needed in the softmax.
# -----------------------------------------------------------------------------
def _attn_kernel(lq_ref, lk_ref, lv_ref, out_ref, *, eps):
    lq = lq_ref[...]                      # (TBb, m, d2)
    lk = lk_ref[...]                      # (TBb, m, d2)

    # Gram[b, i, j] = <logK_bi, logQ_bj>
    gram = lax.dot_general(lk, lq, (((2,), (2,)), ((0,), (0,))),
                           preferred_element_type=jnp.float32)   # (TBb, m, m)
    kk = jnp.sum(lk * lk, axis=-1, keepdims=True)                # (TBb, m, 1)
    qq = jnp.sum(lq * lq, axis=-1)                               # (TBb, m)

    energy = kk + qq[:, None, :] - 2.0 * gram + jnp.float32(eps)
    f = pl.reciprocal(1.0 + jnp.log(1.0 + energy), approx=True)

    # softmax over the key axis i
    ex = jnp.exp(f)
    prob = ex * pl.reciprocal(jnp.sum(ex, axis=1, keepdims=True), approx=True)

    # Late logV load keeps vreg pressure low until the final mixing matmul.
    lv = lv_ref[...]                      # (TBb, m, d2)
    # out[b, j, :] = sum_i P[b, i, j] * logV[b, i, :]
    out_ref[...] = lax.dot_general(prob, lv, (((1,), (1,)), ((0,), (0,))),
                                   preferred_element_type=jnp.float32)


def attention_mix(logq, logk, logv, d_out):
    bs, m, d2 = logq.shape

    # Batch elements per grid step, sized against the per-step VMEM budget
    # (3 inputs + 1 output double-buffered, plus (m,m) temps), keeping >=2
    # grid steps whenever bs allows (v7x has 2 TensorCores).
    per_b_bytes = 4 * (8 * m * d2 + 4 * m * m)
    cap = max(1, _STEP_BUDGET_BYTES // per_b_bytes)
    tbb = _choose_tile(bs, cap, 1)
    bs_pad = _round_up(bs, tbb)
    if bs_pad != bs:
        pad = ((0, bs_pad - bs), (0, 0), (0, 0))
        logq = jnp.pad(logq, pad)
        logk = jnp.pad(logk, pad)
        logv = jnp.pad(logv, pad)

    kern = functools.partial(_attn_kernel, eps=float(d_out) * 1e-6)
    in_spec = pl.BlockSpec((tbb, m, d2), lambda b: (b, 0, 0))
    out = pl.pallas_call(
        kern,
        out_shape=jax.ShapeDtypeStruct((bs_pad, m, d2), jnp.float32),
        grid=(bs_pad // tbb,),
        in_specs=[in_spec, in_spec, in_spec],
        out_specs=pl.BlockSpec((tbb, m, d2), lambda b: (b, 0, 0)),
        compiler_params=pltpu.CompilerParams(
            dimension_semantics=("parallel",),
            vmem_limit_bytes=_VMEM_LIMIT_BYTES),
    )(logq, logk, logv)
    return out[:bs]


# -----------------------------------------------------------------------------
# Plain-JAX glue: matrix log / exp
# -----------------------------------------------------------------------------
# TODO(synk): torch.svd / torch.linalg.eigh (matrix log / exp) have no Pallas
# TPU equivalent; implemented with jnp.linalg.eigh / jnp.linalg.svd around the
# Pallas kernels.
def tensor_log_eigh(t):
    # t is symmetric PSD, so eigh-based log == the module's SVD-based log,
    # and one batched eigh is much cheaper than batched SVD.
    s, u = jnp.linalg.eigh(t)
    return (u * jnp.log(s + 1e-6)[..., None, :]) @ jnp.swapaxes(u, -1, -2)


def tensor_log_svd(t):
    # Literal port of the PyTorch tensor_log (used only in the reference path).
    u, s, vh = jnp.linalg.svd(t)
    return u @ (jnp.log(s + 1e-6)[..., :, None] * vh)


def tensor_exp(t):
    s, u = jnp.linalg.eigh(t)
    return (u * jnp.exp(s)[..., None, :]) @ jnp.swapaxes(u, -1, -2)


# -----------------------------------------------------------------------------
# AttentionManifold.forward
# -----------------------------------------------------------------------------
def attention_manifold_forward(x, wq, wk, wv, shape=None):
    d_out, d_in = wq.shape
    if x.ndim == 3 and shape is not None:
        x = x.reshape(shape[0], shape[1], d_in, d_in)
    x = x.astype(jnp.float32)
    bs, m = x.shape[0], x.shape[1]
    n = bs * m

    d2_in = d_in * d_in
    d2_out = d_out * d_out
    k_pad = _round_up(d2_in, 128)
    nw = 3 * d2_out
    nw_pad = _round_up(nw, 128)

    # Kronecker-stacked weight: vec(W X W^T) = vec(X) @ (W ⊗ W)^T, Q|K|V stacked.
    # Kept in f32: bf16 MXU inputs would be faster but spend most of the
    # accuracy budget of the 5e-2 correctness check below.
    w_mat = jnp.concatenate(
        [jnp.kron(w.astype(jnp.float32), w.astype(jnp.float32))
         for w in (wq, wk, wv)], axis=0).T                 # (d_in^2, 3*d_out^2)
    w_mat = jnp.pad(w_mat, ((0, k_pad - d2_in), (0, nw_pad - nw)))

    x_rows = x.reshape(n, d2_in)
    if k_pad != d2_in:
        x_rows = jnp.pad(x_rows, ((0, 0), (0, k_pad - d2_in)))

    qkv = spd_qkv_transform(x_rows, w_mat)                 # (n, nw_pad)
    qkv_mats = qkv[:, :nw].reshape(n, 3, d_out, d_out)

    # ONE batched matrix log (symmetric eigh) for Q, K and V together.
    logs = tensor_log_eigh(qkv_mats).reshape(bs, m, 3, d2_out)
    logq, logk, logv = logs[:, :, 0], logs[:, :, 1], logs[:, :, 2]

    mixed = attention_mix(logq, logk, logv, d_out)         # (bs, m, d_out^2)
    out = tensor_exp(mixed.reshape(bs, m, d_out, d_out))
    out_shape = [bs, m, -1]
    return out.reshape(bs * m, d_out, d_out), out_shape


# -----------------------------------------------------------------------------
# Pure-JAX reference (mirrors the PyTorch code path) for a correctness check
# -----------------------------------------------------------------------------
def reference_forward(x, wq, wk, wv):
    d_out, d_in = wq.shape
    x = x.astype(jnp.float32)
    bs, m = x.shape[0], x.shape[1]
    xf = x.reshape(bs * m, d_in, d_in)

    def trans(w):
        y = jnp.einsum('oi,nij,pj->nop', w, xf, w,
                       precision=lax.Precision.HIGHEST)
        return y.reshape(bs, m, d_out, d_out)

    q, k, v = trans(wq), trans(wk), trans(wv)
    q_exp = jnp.tile(q, (1, m, 1, 1))                # Q.repeat(1, m, 1, 1)
    k_exp = jnp.repeat(k, m, axis=1)                 # K.unsqueeze(2).repeat.view
    lq, lk = tensor_log_svd(q_exp), tensor_log_svd(k_exp)
    inner = lq - lk
    mm = inner @ jnp.swapaxes(inner, -1, -2)
    s = jnp.linalg.svd(mm, compute_uv=False) + 1e-6
    energy = jnp.sum(s, axis=-1).reshape(bs, m, m)
    f = 1.0 / (1.0 + jnp.log(1.0 + energy))
    prob = jnp.transpose(jax.nn.softmax(f, axis=-2), (0, 2, 1))
    lv = tensor_log_svd(v).reshape(bs, m, d_out * d_out)
    out = jnp.einsum('bji,bid->bjd', prob, lv, precision=lax.Precision.HIGHEST)
    out = tensor_exp(out.reshape(bs, m, d_out, d_out))
    return out.reshape(bs * m, d_out, d_out), [bs, m, -1]


if __name__ == "__main__":
    bs, m, d_in, d_out = 2, 8, 16, 8

    key = jax.random.PRNGKey(0)
    kx, kq, kkey, kv = jax.random.split(key, 4)

    # SPD inputs: A A^T / d_in + I  (well-conditioned)
    a = jax.random.normal(kx, (bs, m, d_in, d_in), jnp.float32)
    x = a @ jnp.swapaxes(a, -1, -2) / d_in + jnp.eye(d_in, dtype=jnp.float32)

    # SPDTransform weights: semi-orthogonal (d_out, d_in), deterministic init
    wq = jax.random.orthogonal(kq, d_in)[:d_out].astype(jnp.float32)
    wk = jax.random.orthogonal(kkey, d_in)[:d_out].astype(jnp.float32)
    wv = jax.random.orthogonal(kv, d_in)[:d_out].astype(jnp.float32)

    out, out_shape = attention_manifold_forward(x, wq, wk, wv)
    out = jax.block_until_ready(out)

    ref_out, ref_shape = reference_forward(x, wq, wk, wv)
    ref_out = jax.block_until_ready(ref_out)

    assert out.shape == (bs * m, d_out, d_out)
    assert out_shape == [bs, m, -1] and ref_shape == [bs, m, -1]
    assert np.all(np.isfinite(np.asarray(out)))
    err = np.max(np.abs(np.asarray(out) - np.asarray(ref_out)))
    assert err < 5e-2, f"mismatch vs reference, max abs err = {err}"

    print("KERNEL_OK")
</pallas_src>

<mosaic_0001>
module attributes {stable_mosaic.version = 11 : i64} {
  func.func @_qkv_kernel(%arg0: i32, %arg1: memref<8x256xf32, #tpu.memory_space<vmem>>, %arg2: memref<256x256xf32, #tpu.memory_space<vmem>>, %arg3: memref<8x256xf32, #tpu.memory_space<vmem>>) attributes {dimension_semantics = [#tpu.dimension_semantics<parallel>], iteration_bounds = array<i64: 2>, scalar_prefetch = 0 : i64, scratch_operands = 0 : i64, tpu.core_type = #tpu.core_type<tc>, window_params = [{transform_indices = @transform_0, window_bounds = array<i64: 8, 256>}, {pipeline_mode = #tpu.pipeline_mode<synchronous>, transform_indices = @transform_1, window_bounds = array<i64: 256, 256>}, {transform_indices = @transform_2, window_bounds = array<i64: 8, 256>}]} {
    %c0 = arith.constant 0 : index
    %c0_0 = arith.constant 0 : index
    %0 = vector.load %arg1[%c0, %c0_0] : memref<8x256xf32, #tpu.memory_space<vmem>>, vector<8x256xf32>
    %c0_1 = arith.constant 0 : index
    %c0_2 = arith.constant 0 : index
    %1 = vector.load %arg2[%c0_1, %c0_2] : memref<256x256xf32, #tpu.memory_space<vmem>>, vector<256x256xf32>
    %cst = arith.constant dense<0.000000e+00> : vector<8x256xf32>
    %2 = tpu.matmul %0, %1, %cst {dimension_numbers = #tpu.dot_dimension_numbers<[1], [0], [0], [1], [0, 0, 1, 1], [], []>} : vector<8x256xf32>, vector<256x256xf32>, vector<8x256xf32> -> vector<8x256xf32>
    %c0_3 = arith.constant 0 : index
    %c0_4 = arith.constant 0 : index
    %3 = vector.load %arg3[%c0_3, %c0_4] : memref<8x256xf32, #tpu.memory_space<vmem>>, vector<8x256xf32>
    tpu.vector_store %arg3[%c0_3, %c0_4], %2 {strides = array<i32>} : memref<8x256xf32, #tpu.memory_space<vmem>>, vector<8x256xf32>,
    return
  }
  func.func @transform_0(%arg0: i32) -> (i32, i32) {
    %c0_i32 = arith.constant 0 : i32
    %c0_i32_0 = arith.constant 0 : i32
    return %arg0, %c0_i32 : i32, i32
  }
  func.func @transform_1(%arg0: i32) -> (i32, i32) {
    %c0_i32 = arith.constant 0 : i32
    %c0_i32_0 = arith.constant 0 : i32
    %c0_i32_1 = arith.constant 0 : i32
    return %c0_i32, %c0_i32_0 : i32, i32
  }
  func.func @transform_2(%arg0: i32) -> (i32, i32) {
    %c0_i32 = arith.constant 0 : i32
    %c0_i32_0 = arith.constant 0 : i32
    return %arg0, %c0_i32 : i32, i32
  }
}

</mosaic_0001>

<llo_original>
// kernel: tpu_custom_call.1
$region0: #{tpu_custom_call.1}
  #allocation0 [shape = 'u32[]', space=smem, size = 0x4, offset = 0x4, fixed_abs, tag = 'smem constant byte address 0x4 - core index']
  #allocation1 [shape = 'u32[144,128]{1,0:T(1,128)}', space=vmem, size = 0x12000, scoped, tag = 'internal scratch']
  %s0 = inlined_call_operand.hbm [shape: f32[16,256], index: 0, kind: input, shape index: {}]
  %s1 = inlined_call_operand.hbm [shape: f32[256,256], index: 1, kind: input, shape index: {}]
  %s2 = inlined_call_operand.hbm [shape: f32[16,256], index: 2, kind: output, shape index: {}]
  %s3 = sld [smem:[#allocation0]]
  $region49: #{tpu_custom_call.1} parent=0
    _
  %s5 = ssub.s32 1, %s3
  %s6 = scalar_select 0, %s5, %s3
  $region1: #{tpu_custom_call.1} parent=0
    #allocation2 [shape = 'u8[16384]{0}', space=vmem, size = 0x4000, scoped, tag = 'input window, operand 0']
    #allocation3 [shape = 's32[2]{0}', space=sflag, size = 0x8, scoped, tag = 'scoped memory for tpu_custom_call.1']
    #allocation4 [shape = 's32[2]{0}', space=sflag, size = 0x8, scoped, tag = 'scoped memory for tpu_custom_call.1']
    #allocation5 [shape = 'u8[262144]{0}', space=vmem, size = 0x40000, scoped, tag = 'input window, operand 1, single buffered']
    #allocation6 [shape = 's32[1]{0}', space=sflag, size = 0x4, scoped, tag = 'scoped memory for tpu_custom_call.1']
    #allocation7 [shape = 'u8[16384]{0}', space=vmem, size = 0x4000, scoped, tag = 'output window, operand 0']
    %7 = vsyncpa [#allocation3], 0
    %s8 = scalar_lea.sflag [#allocation3], 1
    %9 = vsyncpa %s8, 0
    %10 = vsyncpa [#allocation6], 0
    %11 = vsyncpa [#allocation4], 0
    %s12 = scalar_lea.sflag [#allocation4], 1
    %13 = vsyncpa %s12, 0
    loop: start=0, step=1, limit=4
    $region2: #{tpu_custom_call.1} parent=1 // loop_pre_header
      _
    $region3: #{tpu_custom_call.1} parent=1 // loop_header
      %s15 = sphi 0, %s19
      %p16 = scmp.ge.s32.totalorder %s15, 4
      %s25 = sphi 0, %s27
      %s28 = sphi 0, %s25
      %s29 = sphi 0, %s28
      %s45 = sphi 0, %s29
      %s49 = sphi 0, %s49
      %s51 = sphi 0, %s49
      %s52 = sphi 0, %s51
      %s66 = sphi 0, %s52
      %s72 = sphi 0, %s74
      %s75 = sphi 0, %s72
      %s76 = sphi 0, %s75
      %s92 = sphi 0, %s76
    $region4: #{tpu_custom_call.1} parent=1 // loop_header_branch
      %18 = sbr.rel (%p16) target = $region8
    $region5: #{tpu_custom_call.1} parent=1 // loop_body
      %s20 = ssub.s32 %s15, 1
      %s21 = ssub.s32 %s15, 2
      %s22 = sadd.s32 %s15, 1
      %s23 = ssub.s32 %s15, %s22
      %p24 = scmp.eq.s32.totalorder %s23, 0
      %s26 = sadd.s32 %s25, 1
      %s27 = scalar_select %p24, %s25, %s26
      %p30 = pneg %p24
      %p31 = scmp.eq.s32.totalorder %s15, 1
      %p32 = por %p30, %p31
      %p33 = scmp.ne.s32.totalorder %s25, %s28
      %p34 = scmp.eq.s32.totalorder %s15, 0
      %p35 = por %p33, %p34
      %p36 = scmp.ne.s32.totalorder %s25, %s28
      %p37 = scmp.eq.s32.totalorder %s20, 1
      %p38 = por %p36, %p37
      %p39 = scmp.ne.s32.totalorder %s28, %s29
      %p40 = scmp.eq.s32.totalorder %s20, 0
      %p41 = por %p39, %p40
      %p42 = scmp.ne.s32.totalorder %s28, %s29
      %p43 = scmp.eq.s32.totalorder %s21, 1
      %p44 = por %p42, %p43
      %p46 = scmp.ne.s32.totalorder %s29, %s45
      %p47 = scmp.eq.s32.totalorder %s21, 0
      %p48 = por %p46, %p47
      %s50 = sadd.s32 %s49, 1
      %p53 = scmp.eq.s32.totalorder %s15, 1
      %p54 = scmp.ne.s32.totalorder %s49, %s51
      %p55 = scmp.eq.s32.totalorder %s15, 0
      %p56 = por %p54, %p55
      %p57 = scmp.ne.s32.totalorder %s49, %s51
      %p58 = scmp.eq.s32.totalorder %s20, 1
      %p59 = por %p57, %p58
      %p60 = scmp.ne.s32.totalorder %s51, %s52
      %p61 = scmp.eq.s32.totalorder %s20, 0
      %p62 = por %p60, %p61
      %p63 = scmp.ne.s32.totalorder %s51, %s52
      %p64 = scmp.eq.s32.totalorder %s21, 1
      %p65 = por %p63, %p64
      %p67 = scmp.ne.s32.totalorder %s52, %s66
      %p68 = scmp.eq.s32.totalorder %s21, 0
      %p69 = por %p67, %p68
      %s70 = ssub.s32 %s15, %s22
      %p71 = scmp.eq.s32.totalorder %s70, 0
      %s73 = sadd.s32 %s72, 1
      %s74 = scalar_select %p71, %s72, %s73
      %p77 = pneg %p71
      %p78 = scmp.eq.s32.totalorder %s15, 1
      %p79 = por %p77, %p78
      %p80 = scmp.ne.s32.totalorder %s72, %s75
      %p81 = scmp.eq.s32.totalorder %s15, 0
      %p82 = por %p80, %p81
      %p83 = scmp.ne.s32.totalorder %s72, %s75
      %p84 = scmp.eq.s32.totalorder %s20, 1
      %p85 = por %p83, %p84
      %p86 = scmp.ne.s32.totalorder %s75, %s76
      %p87 = scmp.eq.s32.totalorder %s20, 0
      %p88 = por %p86, %p87
      %p89 = scmp.ne.s32.totalorder %s75, %s76
      %p90 = scmp.eq.s32.totalorder %s21, 1
      %p91 = por %p89, %p90
      %p93 = scmp.ne.s32.totalorder %s76, %s92
      %p94 = scmp.eq.s32.totalorder %s21, 0
      %p95 = por %p93, %p94
      %p96 = scmp.le.s32.totalorder 1, %s15
      %p97 = scmp.lt.s32.totalorder %s15, 3
      %p98 = pnand %p96, %p97
      %p99 = pneg %p98
      // Predicated region
      $region9: #{tpu_custom_call.1} parent=5 // pred_check
        _
      $region10: #{tpu_custom_call.1} parent=5 // pred_check_branch
        %101 = sbr.rel (%p98) target = $region12
      $region11: #{tpu_custom_call.1} parent=5 // pred_region
        %s102 = ssub.s32 %s15, 1
        // Predicated region
        $region13: #{tpu_custom_call.1} parent=11 // pred_check
          %p103 = pneg %p62
        $region14: #{tpu_custom_call.1} parent=11 // pred_check_branch
          %105 = sbr.rel (%p103) target = $region16
        $region15: #{tpu_custom_call.1} parent=11 // pred_region
          %s107 = ssub.s32 8192, 8192
          %108 = vsyncadd [#allocation6], %s107
          %s109 = sshll.u32 [#allocation5], 4
          %s110 = int_to_ptr.vmem [resolvable:$true] %s109
          %115 = dma.hbm_to_vmem [thread:$0]  %s1, 8192, %s110, [#allocation6], 256, 256, 16
        $region16: #{tpu_custom_call.1} parent=11 // pred_fallthru
          _
      $region12: #{tpu_custom_call.1} parent=5 // pred_fallthru
        _
      %p116 = scmp.lt.s32.totalorder %s15, 2
      // Predicated region
      $region17: #{tpu_custom_call.1} parent=5 // pred_check
        %p117 = pneg %p116
      $region18: #{tpu_custom_call.1} parent=5 // pred_check_branch
        %119 = sbr.rel (%p117) target = $region20
      $region19: #{tpu_custom_call.1} parent=5 // pred_region
        // Predicated region
        $region21: #{tpu_custom_call.1} parent=19 // pred_check
          %p120 = pneg %p35
        $region22: #{tpu_custom_call.1} parent=19 // pred_check_branch
          %122 = sbr.rel (%p120) target = $region24
        $region23: #{tpu_custom_call.1} parent=19 // pred_region
          %s123 = sand.u32 %s25, 1
          %s124 = scalar_lea.sflag [#allocation3], %s123
          %s125 = sand.u32 %s25, 1
          %s126 = smul.addr %s125, 16
          %s127 = scalar_lea.vmem [#allocation2], %s126
          %s129 = ssub.s32 256, 256
          %130 = vsyncadd %s124, %s129
          %s131 = smul.addr %s15, 2
          %s132 = smul.addr %s131, 128
          %s133 = scalar_lea.hbm %s0, %s132
          %s135 = sshll.u32 %s127, 4
          %s136 = int_to_ptr.vmem [resolvable:$true] %s135
          %138 = dma.hbm_to_vmem [thread:$0]  %s133, 256, %s136, %s124
        $region24: #{tpu_custom_call.1} parent=19 // pred_fallthru
          _
      $region20: #{tpu_custom_call.1} parent=5 // pred_fallthru
        _
      %p139 = scmp.le.s32.totalorder 1, %s15
      %p140 = scmp.lt.s32.totalorder %s15, 3
      %p141 = pnand %p139, %p140
      %p142 = pneg %p141
      // Predicated region
      $region25: #{tpu_custom_call.1} parent=5 // pred_check
        _
      $region26: #{tpu_custom_call.1} parent=5 // pred_check_branch
        %144 = sbr.rel (%p141) target = $region28
      $region27: #{tpu_custom_call.1} parent=5 // pred_region
        %s145 = ssub.s32 %s15, 1
        %s146 = sand.u32 %s28, 1
        %s147 = scalar_lea.sflag [#allocation3], %s146
        %s148 = sand.u32 %s28, 1
        %s149 = smul.addr %s148, 16
        %s150 = scalar_lea.vmem [#allocation2], %s149
        // Predicated region
        $region29: #{tpu_custom_call.1} parent=27 // pred_check
          %p151 = pneg %p41
        $region30: #{tpu_custom_call.1} parent=27 // pred_check_branch
          %153 = sbr.rel (%p151) target = $region32
        $region31: #{tpu_custom_call.1} parent=27 // pred_region
          %154 = dma.done %s147, 256
        $region32: #{tpu_custom_call.1} parent=27 // pred_fallthru
          _
        // Predicated region
        $region33: #{tpu_custom_call.1} parent=27 // pred_check
          %p155 = pneg %p62
        $region34: #{tpu_custom_call.1} parent=27 // pred_check_branch
          %157 = sbr.rel (%p155) target = $region36
        $region35: #{tpu_custom_call.1} parent=27 // pred_region
          %158 = dma.done [#allocation6], 8192
        $region36: #{tpu_custom_call.1} parent=27 // pred_fallthru
          _
        %s159 = sand.u32 %s28, 1
        %s160 = scalar_lea.sflag [#allocation3], %s159
        %s161 = sand.u32 %s28, 1
        %s162 = smul.addr %s161, 16
        %s163 = scalar_lea.vmem [#allocation2], %s162
        %p164 = pneg %p41
        %p165 = pneg %p38
        %p166 = pneg %p62
        %p167 = pneg %p59
        %p168 = pneg %p88
        %p169 = pneg %p85
        %s170 = sand.u32 %s75, 1
        %s171 = scalar_lea.sflag [#allocation4], %s170
        %s172 = sand.u32 %s75, 1
        %s173 = smul.addr %s172, 16
        %s174 = scalar_lea.vmem [#allocation7], %s173
        %v175 = vld [vmem:[%s150] sm:$0xff]
        %v176 = vld [vmem:[%s150 + $0x8] sm:$0xff]
        %v177 = vld [vmem:[#allocation5] sm:$0xff]
        %v178 = vld [vmem:[#allocation5 + $0x8] sm:$0xff]
        %v179 = vld [vmem:[#allocation5 + $0x10] sm:$0xff]
        %v180 = vld [vmem:[#allocation5 + $0x18] sm:$0xff]
        %v181 = vld [vmem:[#allocation5 + $0x20] sm:$0xff]
        %v182 = vld [vmem:[#allocation5 + $0x28] sm:$0xff]
        %v183 = vld [vmem:[#allocation5 + $0x30] sm:$0xff]
        %v184 = vld [vmem:[#allocation5 + $0x38] sm:$0xff]
        %v185 = vld [vmem:[#allocation5 + $0x40] sm:$0xff]
        %v186 = vld [vmem:[#allocation5 + $0x48] sm:$0xff]
        %v187 = vld [vmem:[#allocation5 + $0x50] sm:$0xff]
        %v188 = vld [vmem:[#allocation5 + $0x58] sm:$0xff]
        %v189 = vld [vmem:[#allocation5 + $0x60] sm:$0xff]
        %v190 = vld [vmem:[#allocation5 + $0x68] sm:$0xff]
        %v191 = vld [vmem:[#allocation5 + $0x70] sm:$0xff]
        %v192 = vld [vmem:[#allocation5 + $0x78] sm:$0xff]
        %v193 = vld [vmem:[#allocation5 + $0x80] sm:$0xff]
        %v194 = vld [vmem:[#allocation5 + $0x88] sm:$0xff]
        %v195 = vld [vmem:[#allocation5 + $0x90] sm:$0xff]
        %v196 = vld [vmem:[#allocation5 + $0x98] sm:$0xff]
        %v197 = vld [vmem:[#allocation5 + $0xa0] sm:$0xff]
        %v198 = vld [vmem:[#allocation5 + $0xa8] sm:$0xff]
        %v199 = vld [vmem:[#allocation5 + $0xb0] sm:$0xff]
        %v200 = vld [vmem:[#allocation5 + $0xb8] sm:$0xff]
        %v201 = vld [vmem:[#allocation5 + $0xc0] sm:$0xff]
        %v202 = vld [vmem:[#allocation5 + $0xc8] sm:$0xff]
        %v203 = vld [vmem:[#allocation5 + $0xd0] sm:$0xff]
        %v204 = vld [vmem:[#allocation5 + $0xd8] sm:$0xff]
        %v205 = vld [vmem:[#allocation5 + $0xe0] sm:$0xff]
        %v206 = vld [vmem:[#allocation5 + $0xe8] sm:$0xff]
        %v207 = vld [vmem:[#allocation5 + $0xf0] sm:$0xff]
        %v208 = vld [vmem:[#allocation5 + $0xf8] sm:$0xff]
        %v209 = vld [vmem:[#allocation5 + $0x100] sm:$0xff]
        %v210 = vld [vmem:[#allocation5 + $0x108] sm:$0xff]
        %v211 = vld [vmem:[#allocation5 + $0x110] sm:$0xff]
        %v212 = vld [vmem:[#allocation5 + $0x118] sm:$0xff]
        %v213 = vld [vmem:[#allocation5 + $0x120] sm:$0xff]
        %v214 = vld [vmem:[#allocation5 + $0x128] sm:$0xff]
        %v215 = vld [vmem:[#allocation5 + $0x130] sm:$0xff]
        %v216 = vld [vmem:[#allocation5 + $0x138] sm:$0xff]
        %v217 = vld [vmem:[#allocation5 + $0x140] sm:$0xff]
        %v218 = vld [vmem:[#allocation5 + $0x148] sm:$0xff]
        %v219 = vld [vmem:[#allocation5 + $0x150] sm:$0xff]
        %v220 = vld [vmem:[#allocation5 + $0x158] sm:$0xff]
        %v221 = vld [vmem:[#allocation5 + $0x160] sm:$0xff]
        %v222 = vld [vmem:[#allocation5 + $0x168] sm:$0xff]
        %v223 = vld [vmem:[#allocation5 + $0x170] sm:$0xff]
        %v224 = vld [vmem:[#allocation5 + $0x178] sm:$0xff]
        %v225 = vld [vmem:[#allocation5 + $0x180] sm:$0xff]
        %v226 = vld [vmem:[#allocation5 + $0x188] sm:$0xff]
        %v227 = vld [vmem:[#allocation5 + $0x190] sm:$0xff]
        %v228 = vld [vmem:[#allocation5 + $0x198] sm:$0xff]
        %v229 = vld [vmem:[#allocation5 + $0x1a0] sm:$0xff]
        %v230 = vld [vmem:[#allocation5 + $0x1a8] sm:$0xff]
        %v231 = vld [vmem:[#allocation5 + $0x1b0] sm:$0xff]
        %v232 = vld [vmem:[#allocation5 + $0x1b8] sm:$0xff]
        %v233 = vld [vmem:[#allocation5 + $0x1c0] sm:$0xff]
        %v234 = vld [vmem:[#allocation5 + $0x1c8] sm:$0xff]
        %v235 = vld [vmem:[#allocation5 + $0x1d0] sm:$0xff]
        %v236 = vld [vmem:[#allocation5 + $0x1d8] sm:$0xff]
        %v237 = vld [vmem:[#allocation5 + $0x1e0] sm:$0xff]
        %v238 = vld [vmem:[#allocation5 + $0x1e8] sm:$0xff]
        %v239 = vld [vmem:[#allocation5 + $0x1f0] sm:$0xff]
        %v240 = vld [vmem:[#allocation5 + $0x1f8] sm:$0xff]
        %241 = vmatprep.subr.mxu0 %v178
        %242 = vmatpush1.msra.mxu0 %v177
        %243 = vmatprep.subr.mxu0 %v180
        %244 = vmatpush1.msra.mxu0 %v179
        %245 = vmatprep.subr.mxu0 %v182
        %246 = vmatpush1.msra.mxu0 %v181
        %247 = vmatprep.subr.mxu0 %v184
        %248 = vmatpush1.msra.mxu0 %v183
        %249 = vmatprep.subr.mxu0 %v186
        %250 = vmatpush1.msra.mxu0 %v185
        %251 = vmatprep.subr.mxu0 %v188
        %252 = vmatpush1.msra.mxu0 %v187
        %253 = vmatprep.subr.mxu0 %v190
        %254 = vmatpush1.msra.mxu0 %v189
        %255 = vmatprep.subr.mxu0 %v192
        %256 = vmatpush1.msra.mxu0 %v191
        %257 = vmatprep.subr.mxu0 %v194
        %258 = vmatpush1.msra.mxu0 %v193
        %259 = vmatprep.subr.mxu0 %v196
        %260 = vmatpush1.msra.mxu0 %v195
        %261 = vmatprep.subr.mxu0 %v198
        %262 = vmatpush1.msra.mxu0 %v197
        %263 = vmatprep.subr.mxu0 %v200
        %264 = vmatpush1.msra.mxu0 %v199
        %265 = vmatprep.subr.mxu0 %v202
        %266 = vmatpush1.msra.mxu0 %v201
        %267 = vmatprep.subr.mxu0 %v204
        %268 = vmatpush1.msra.mxu0 %v203
        %269 = vmatprep.subr.mxu0 %v206
        %270 = vmatpush1.msra.mxu0 %v205
        %271 = vmatprep.subr.mxu0 %v208
        %272 = vmatpush1.msra.mxu0 %v207
        %273 = vmatprep.subr.mxu0 %v210
        %274 = vmatpush1.msra.mxu0 %v209
        %275 = vmatprep.subr.mxu0 %v212
        %276 = vmatpush1.msra.mxu0 %v211
        %277 = vmatprep.subr.mxu0 %v214
        %278 = vmatpush1.msra.mxu0 %v213
        %279 = vmatprep.subr.mxu0 %v216
        %280 = vmatpush1.msra.mxu0 %v215
        %281 = vmatprep.subr.mxu0 %v218
        %282 = vmatpush1.msra.mxu0 %v217
        %283 = vmatprep.subr.mxu0 %v220
        %284 = vmatpush1.msra.mxu0 %v219
        %285 = vmatprep.subr.mxu0 %v222
        %286 = vmatpush1.msra.mxu0 %v221
        %287 = vmatprep.subr.mxu0 %v224
        %288 = vmatpush1.msra.mxu0 %v223
        %289 = vmatprep.subr.mxu0 %v226
        %290 = vmatpush1.msra.mxu0 %v225
        %291 = vmatprep.subr.mxu0 %v228
        %292 = vmatpush1.msra.mxu0 %v227
        %293 = vmatprep.subr.mxu0 %v230
        %294 = vmatpush1.msra.mxu0 %v229
        %295 = vmatprep.subr.mxu0 %v232
        %296 = vmatpush1.msra.mxu0 %v231
        %297 = vmatprep.subr.mxu0 %v234
        %298 = vmatpush1.msra.mxu0 %v233
        %299 = vmatprep.subr.mxu0 %v236
        %300 = vmatpush1.msra.mxu0 %v235
        %301 = vmatprep.subr.mxu0 %v238
        %302 = vmatpush1.msra.mxu0 %v237
        %303 = vmatprep.subr.mxu0 %v240
        %304 = vmatpush1.msra.mxu0 %v239
        %305 = vmatprep.mubr.f32.mxu0 %v176
        %306 = vmatmul.mubr.f32.gmra.mrb[0].mxu0 %v175
        %v307 = vpop.f32.mrb[0].mxu0
        %v308 = vadd.f32 0.0, %v307
        %v309 = vpop.f32.mrb[0].mxu0
        %v310 = vadd.f32 0.0, %v309
        %311 = vdwg.mxu0
        %312 = vst [vmem:[%s174] sm:$0xff] %v308
        %313 = vst [vmem:[%s174 + $0x8] sm:$0xff] %v310
        %s314 = sand.u32 %s75, 1
        %s315 = scalar_lea.sflag [#allocation4], %s314
        %s316 = sand.u32 %s75, 1
        %s317 = smul.addr %s316, 16
        %s318 = scalar_lea.vmem [#allocation7], %s317
        // Predicated region
        $region37: #{tpu_custom_call.1} parent=27 // pred_check
          %p319 = pneg %p85
        $region38: #{tpu_custom_call.1} parent=27 // pred_check_branch
          %321 = sbr.rel (%p319) target = $region40
        $region39: #{tpu_custom_call.1} parent=27 // pred_region
          %s323 = ssub.s32 256, 256
          %324 = vsyncadd %s315, %s323
          %s325 = smul.addr %s20, 2
          %s326 = smul.addr %s325, 128
          %s327 = scalar_lea.hbm %s2, %s326
          %s329 = sshll.u32 %s318, 4
          %s330 = int_to_ptr.vmem [resolvable:$true] %s329
          %332 = dma.vmem_to_hbm [thread:$0]  %s330, 256, %s327, %s315
        $region40: #{tpu_custom_call.1} parent=27 // pred_fallthru
          _
      $region28: #{tpu_custom_call.1} parent=5 // pred_fallthru
        _
      %p333 = scmp.le.s32.totalorder 2, %s15
      // Predicated region
      $region41: #{tpu_custom_call.1} parent=5 // pred_check
        %p334 = pneg %p333
      $region42: #{tpu_custom_call.1} parent=5 // pred_check_branch
        %336 = sbr.rel (%p334) target = $region44
      $region43: #{tpu_custom_call.1} parent=5 // pred_region
        %s337 = ssub.s32 %s15, 2
        // Predicated region
        $region45: #{tpu_custom_call.1} parent=43 // pred_check
          %p338 = pneg %p91
        $region46: #{tpu_custom_call.1} parent=43 // pred_check_branch
          %340 = sbr.rel (%p338) target = $region48
        $region47: #{tpu_custom_call.1} parent=43 // pred_region
          %s341 = sand.u32 %s76, 1
          %s342 = scalar_lea.sflag [#allocation4], %s341
          %s343 = sand.u32 %s76, 1
          %s344 = smul.addr %s343, 16
          %s345 = scalar_lea.vmem [#allocation7], %s344
          %346 = dma.done %s342, 256
        $region48: #{tpu_custom_call.1} parent=43 // pred_fallthru
          _
      $region44: #{tpu_custom_call.1} parent=5 // pred_fallthru
        _
    $region6: #{tpu_custom_call.1} parent=1 // loop_footer
      %s19 = sadd.s32 1, %s15
    $region7: #{tpu_custom_call.1} parent=1 // loop_footer_branch
      %14 = sbr.rel target = $region3
    $region8: #{tpu_custom_call.1} parent=1 // loop_exit
      _
    %347 = vsyncpa [#allocation3], 1
    %s348 = scalar_lea.sflag [#allocation3], 1
    %349 = vsyncpa %s348, 1
    %350 = vsyncpa [#allocation6], 1
    %351 = vsyncpa [#allocation4], 1
    %s352 = scalar_lea.sflag [#allocation4], 1
    %353 = vsyncpa %s352, 1

</llo_original>
